<compile_context>
chip_gen: v5e
topology: v5e:2x2
jax: 0.10.0
libtpu: 0.0.40
codegen_flags: <defaults>
</compile_context>

<pallas_src>
import jax
import jax.numpy as jnp
from jax import lax
from jax.experimental import pallas as pl
from jax.experimental.pallas import tpu as pltpu


def _round_up(x, m):
    return ((x + m - 1) // m) * m


def _vmem_capacity_bytes():
    """Generation-aware physical VMEM (v5e/v6e: 128 MiB, v7x: 64 MiB)."""
    try:
        cap = int(pltpu.get_tpu_info().vmem_capacity_bytes)
        if cap > 0:
            return cap
    except Exception:
        pass
    return 64 * 1024 * 1024  # conservative fallback (covers v7x)


def _derive_b_tile(src_len, e2, dec_h, budget_bytes):
    """Largest multiple-of-8 batch tile whose steady-state footprint fits."""
    per_row = (
        2 * src_len * e2 * 2        # enc tile (bf16), double-buffered
        + 3 * src_len * dec_h * 4   # f32 intermediates: enc_proj, energy, slack
        + 4 * src_len * 4           # scores + output (f32), double-buffered
        + 6 * dec_h * 4             # hidden row + projection + slack
    )
    fixed = 4 * (e2 * dec_h + dec_h * dec_h + 2 * dec_h) * 4  # weights/bias/v
    bt = (budget_bytes - fixed) // max(per_row, 1)
    return int(max(8, min(256, (bt // 8) * 8)))


def _vmem_limit_bytes(b_tile, src_len, e2, dec_h, cap):
    """Scoped-VMEM limit sized to the chosen tile, with headroom, <= physical."""
    need = (
        2 * src_len * b_tile * e2 * 2            # enc tile x2 buffers (bf16)
        + 2 * b_tile * dec_h * 2                 # hidden tile x2 (bf16)
        + 2 * (e2 * dec_h + dec_h * dec_h) * 2   # weights x2 (bf16)
        + 2 * b_tile * src_len * 4               # output x2 (f32)
        + 4 * src_len * b_tile * dec_h * 4       # f32 intermediates slack
        + (4 << 20)                              # compiler scratch headroom
    )
    return int(min(cap, max(need, 32 * 1024 * 1024)))


def attention_kernel(enc_ref, hid_ref, w_enc_ref, w_dec_ref, b_ref, v_ref, o_ref):
    # enc_ref   : (S, BT, 2E) bf16  encoder outputs, native seq-major layout
    # hid_ref   : (BT, H)     bf16  decoder hidden rows for this batch tile
    # w_enc_ref : (2E, H)     bf16  attn.weight^T rows hitting enc_outs
    # w_dec_ref : (H, H)      bf16  attn.weight^T rows hitting dec hidden
    # b_ref     : (1, H)      f32   attn.bias
    # v_ref     : (1, H)      f32   v projection (row vector)
    # o_ref     : (BT, S)     f32   softmax attention weights (lanes = S)
    S, BT, E2 = enc_ref.shape
    H = hid_ref.shape[1]

    # Encoder contribution: one MXU matmul for the whole tile.
    # (S*BT, 2E) @ (2E, H) -> (S*BT, H), f32 accumulation.
    enc_flat = enc_ref[...].reshape(S * BT, E2)
    enc_proj = jnp.dot(
        enc_flat, w_enc_ref[...], preferred_element_type=jnp.float32
    ).reshape(S, BT, H)

    # Hidden contribution computed once per batch row (not replicated S times).
    hid_proj = jnp.dot(
        hid_ref[...], w_dec_ref[...], preferred_element_type=jnp.float32
    ) + b_ref[...]

    # TODO(synk): on v6e/v7x tanh/exp could run in bf16 if the EUP slot binds;
    # kept f32 here (required on v5e, keeps numerics tight).
    energy = jnp.tanh(enc_proj + hid_proj[None, :, :])            # (S, BT, H)

    # v-projection as VPU multiply + lane reduction over H (no 1-col MXU op).
    v_row = v_ref[...].reshape(1, 1, H)
    score = jnp.sum(energy * v_row, axis=-1)                      # (S, BT)

    # Batch-major, lane-dense scores for the softmax and the output store.
    score_t = score.T                                             # (BT, S)
    m = jnp.max(score_t, axis=-1, keepdims=True)
    e = jnp.exp(score_t - m)
    denom = jnp.sum(e, axis=-1, keepdims=True)
    o_ref[...] = (e / denom).astype(o_ref.dtype)


def attention_forward(hidden, enc_outs, w, b, v, *, b_tile=None):
    """hidden: (bs, dec_h), enc_outs: (src_len, bs, 2*enc_h) -> (bs, src_len)."""
    src_len, bs, e2 = enc_outs.shape
    dec_h = hidden.shape[1]
    assert w.shape == (dec_h, e2 + dec_h)

    # --- generation-aware VMEM budget & batch tile selection ---
    cap = _vmem_capacity_bytes()
    budget = int(cap * 0.6)                      # leave headroom on all gens
    if b_tile is None:
        b_tile = _derive_b_tile(src_len, e2, dec_h, budget)
    b_tile = max(8, (int(b_tile) // 8) * 8)
    b_tile = min(b_tile, _round_up(bs, 8))

    # Prefer >= 2 grid steps so both v7x TensorCores get work.
    while _round_up(bs, b_tile) // b_tile < 2 and b_tile > 8:
        b_tile = max(8, (b_tile // 2 // 8) * 8)

    # Pad the batch (instead of a full-batch fallback) so every block is
    # sublane-aligned; padded rows are independent and sliced off below.
    bs_p = _round_up(bs, b_tile)
    hid_in, enc_in = hidden, enc_outs
    if bs_p != bs:
        hid_in = jnp.pad(hid_in, ((0, bs_p - bs), (0, 0)))
        enc_in = jnp.pad(enc_in, ((0, 0), (0, bs_p - bs), (0, 0)))

    # bf16 streaming of the bandwidth-dominant operands; f32 accumulation.
    enc_in = enc_in.astype(jnp.bfloat16)
    hid_in = hid_in.astype(jnp.bfloat16)

    # Split attn.weight along its feature axis (concat order is [dec ; enc])
    # and pre-transpose so both kernel matmuls are canonical (M,K)@(K,N).
    w_dec_t = jnp.asarray(w[:, :dec_h].T, dtype=jnp.bfloat16)     # (H, H)
    w_enc_t = jnp.asarray(w[:, dec_h:].T, dtype=jnp.bfloat16)     # (2E, H)
    b2 = b.reshape(1, dec_h).astype(jnp.float32)
    v2 = v.reshape(1, dec_h).astype(jnp.float32)

    grid = (bs_p // b_tile,)
    out = pl.pallas_call(
        attention_kernel,
        out_shape=jax.ShapeDtypeStruct((bs_p, src_len), jnp.float32),
        grid_spec=pltpu.PrefetchScalarGridSpec(
            num_scalar_prefetch=0,
            grid=grid,
            in_specs=[
                pl.BlockSpec((src_len, b_tile, e2), lambda i: (0, i, 0)),
                pl.BlockSpec((b_tile, dec_h), lambda i: (i, 0)),
                pl.BlockSpec((e2, dec_h), lambda i: (0, 0)),
                pl.BlockSpec((dec_h, dec_h), lambda i: (0, 0)),
                pl.BlockSpec((1, dec_h), lambda i: (0, 0)),
                pl.BlockSpec((1, dec_h), lambda i: (0, 0)),
            ],
            out_specs=pl.BlockSpec((b_tile, src_len), lambda i: (i, 0)),
        ),
        compiler_params=pltpu.CompilerParams(
            dimension_semantics=("parallel",),
            vmem_limit_bytes=_vmem_limit_bytes(b_tile, src_len, e2, dec_h, cap),
        ),
    )(enc_in, hid_in, w_enc_t, w_dec_t, b2, v2)

    return out[:bs] if bs_p != bs else out


def attention_reference(hidden, enc_outs, w, b, v):
    """Pure-JAX f32 reference mirroring the PyTorch forward (concat form)."""
    src_len, bs, _ = enc_outs.shape
    dec_hidden = jnp.broadcast_to(hidden[:, None, :], (bs, src_len, hidden.shape[1]))
    enc_b = jnp.transpose(enc_outs, (1, 0, 2))
    x = jnp.concatenate([dec_hidden, enc_b], axis=2)
    energy = jnp.tanh(x @ w.T + b)
    attn = (energy @ v)[..., 0]
    return jax.nn.softmax(attn, axis=1)


if __name__ == "__main__":
    # Small shapes consistent with the module; bs=16 exercises the batch-tiled
    # grid (the >=2-step fixup yields two parallel grid steps).
    bs, src_len = 16, 8
    enc_h, dec_h = 16, 32
    feat = 2 * enc_h + dec_h

    key = jax.random.PRNGKey(0)
    k_hid, k_enc, k_w, k_b, k_v = jax.random.split(key, 5)

    hidden = jax.random.normal(k_hid, (bs, dec_h), dtype=jnp.float32)
    enc_outs = jax.random.normal(k_enc, (src_len, bs, 2 * enc_h), dtype=jnp.float32)

    # Deterministic parameter init (nn.Linear-style uniform, torch.rand-style v).
    bound = 1.0 / (feat ** 0.5)
    w = jax.random.uniform(k_w, (dec_h, feat), jnp.float32, -bound, bound)
    b = jax.random.uniform(k_b, (dec_h,), jnp.float32, -bound, bound)
    v = jax.random.uniform(k_v, (dec_h, 1), jnp.float32, 0.0, 1.0)

    out = attention_forward(hidden, enc_outs, w, b, v)
    jax.block_until_ready(out)

    ref = attention_reference(hidden, enc_outs, w, b, v)
    assert out.shape == (bs, src_len)
    # bf16 streaming of enc/hidden/weights -> compare with loosened tolerance.
    assert jnp.allclose(out, ref, atol=3e-2, rtol=3e-2), "mismatch vs reference"
    assert jnp.allclose(jnp.sum(out, axis=1), 1.0, atol=1e-5)

    print("KERNEL_OK")
</pallas_src>

<mosaic_0001>
module attributes {stable_mosaic.version = 11 : i64} {
  func.func @attention_kernel(%arg0: i32, %arg1: memref<8x8x32xbf16, #tpu.memory_space<vmem>>, %arg2: memref<8x32xbf16, #tpu.memory_space<vmem>>, %arg3: memref<32x32xbf16, #tpu.memory_space<vmem>>, %arg4: memref<32x32xbf16, #tpu.memory_space<vmem>>, %arg5: memref<1x32xf32, #tpu.memory_space<vmem>>, %arg6: memref<1x32xf32, #tpu.memory_space<vmem>>, %arg7: memref<8x8xf32, #tpu.memory_space<vmem>>) attributes {dimension_semantics = [#tpu.dimension_semantics<parallel>], iteration_bounds = array<i64: 2>, scalar_prefetch = 0 : i64, scratch_operands = 0 : i64, tpu.core_type = #tpu.core_type<tc>, window_params = [{transform_indices = @transform_0, window_bounds = array<i64: 8, 8, 32>}, {transform_indices = @transform_1, window_bounds = array<i64: 8, 32>}, {pipeline_mode = #tpu.pipeline_mode<synchronous>, transform_indices = @transform_2, window_bounds = array<i64: 32, 32>}, {pipeline_mode = #tpu.pipeline_mode<synchronous>, transform_indices = @transform_3, window_bounds = array<i64: 32, 32>}, {pipeline_mode = #tpu.pipeline_mode<synchronous>, transform_indices = @transform_4, window_bounds = array<i64: 1, 32>}, {pipeline_mode = #tpu.pipeline_mode<synchronous>, transform_indices = @transform_5, window_bounds = array<i64: 1, 32>}, {transform_indices = @transform_6, window_bounds = array<i64: 8, 8>}]} {
    %c0 = arith.constant 0 : index
    %c0_0 = arith.constant 0 : index
    %c0_1 = arith.constant 0 : index
    %0 = vector.load %arg1[%c0, %c0_0, %c0_1] : memref<8x8x32xbf16, #tpu.memory_space<vmem>>, vector<8x8x32xbf16>
    %1 = vector.shape_cast %0 : vector<8x8x32xbf16> to vector<64x32xbf16>
    %c0_2 = arith.constant 0 : index
    %c0_3 = arith.constant 0 : index
    %2 = vector.load %arg3[%c0_2, %c0_3] : memref<32x32xbf16, #tpu.memory_space<vmem>>, vector<32x32xbf16>
    %cst = arith.constant dense<0.000000e+00> : vector<64x32xf32>
    %3 = tpu.matmul %1, %2, %cst {dimension_numbers = #tpu.dot_dimension_numbers<[1], [0], [0], [1], [0, 0, 1, 1], [], []>} : vector<64x32xbf16>, vector<32x32xbf16>, vector<64x32xf32> -> vector<64x32xf32>
    %4 = vector.shape_cast %3 : vector<64x32xf32> to vector<8x8x32xf32>
    %c0_4 = arith.constant 0 : index
    %c0_5 = arith.constant 0 : index
    %5 = vector.load %arg2[%c0_4, %c0_5] : memref<8x32xbf16, #tpu.memory_space<vmem>>, vector<8x32xbf16>
    %c0_6 = arith.constant 0 : index
    %c0_7 = arith.constant 0 : index
    %6 = vector.load %arg4[%c0_6, %c0_7] : memref<32x32xbf16, #tpu.memory_space<vmem>>, vector<32x32xbf16>
    %cst_8 = arith.constant dense<0.000000e+00> : vector<8x32xf32>
    %7 = tpu.matmul %5, %6, %cst_8 {dimension_numbers = #tpu.dot_dimension_numbers<[1], [0], [0], [1], [0, 0, 1, 1], [], []>} : vector<8x32xbf16>, vector<32x32xbf16>, vector<8x32xf32> -> vector<8x32xf32>
    %c0_9 = arith.constant 0 : index
    %c0_10 = arith.constant 0 : index
    %8 = vector.load %arg5[%c0_9, %c0_10] : memref<1x32xf32, #tpu.memory_space<vmem>>, vector<1x32xf32>
    %9 = vector.broadcast %8 : vector<1x32xf32> to vector<8x32xf32>
    %10 = arith.addf %7, %9 : vector<8x32xf32>
    %11 = vector.shape_cast %10 : vector<8x32xf32> to vector<1x8x32xf32>
    %12 = vector.broadcast %11 : vector<1x8x32xf32> to vector<8x8x32xf32>
    %13 = arith.addf %4, %12 : vector<8x8x32xf32>
    %14 = math.tanh %13 : vector<8x8x32xf32>
    %c0_11 = arith.constant 0 : index
    %c0_12 = arith.constant 0 : index
    %15 = vector.load %arg6[%c0_11, %c0_12] : memref<1x32xf32, #tpu.memory_space<vmem>>, vector<1x32xf32>
    %16 = vector.shape_cast %15 : vector<1x32xf32> to vector<1x1x32xf32>
    %17 = vector.broadcast %16 : vector<1x1x32xf32> to vector<8x8x32xf32>
    %18 = arith.mulf %14, %17 : vector<8x8x32xf32>
    %cst_13 = arith.constant dense<0.000000e+00> : vector<8x8xf32>
    %19 = vector.multi_reduction <add>, %18, %cst_13 [2] : vector<8x8x32xf32> to vector<8x8xf32>
    %20 = tpu.transpose %19, [1, 0] : vector<8x8xf32> -> vector<8x8xf32>
    %cst_14 = arith.constant dense<0xFF800000> : vector<8xf32>
    %21 = vector.multi_reduction <maximumf>, %20, %cst_14 [1] : vector<8x8xf32> to vector<8xf32>
    %22 = vector.shape_cast %21 : vector<8xf32> to vector<8x1xf32>
    %23 = vector.broadcast %22 : vector<8x1xf32> to vector<8x8xf32>
    %24 = arith.subf %20, %23 : vector<8x8xf32>
    %25 = math.exp %24 : vector<8x8xf32>
    %cst_15 = arith.constant dense<0.000000e+00> : vector<8xf32>
    %26 = vector.multi_reduction <add>, %25, %cst_15 [1] : vector<8x8xf32> to vector<8xf32>
    %27 = vector.shape_cast %26 : vector<8xf32> to vector<8x1xf32>
    %28 = vector.broadcast %27 : vector<8x1xf32> to vector<8x8xf32>
    %29 = arith.divf %25, %28 : vector<8x8xf32>
    %c0_16 = arith.constant 0 : index
    %c0_17 = arith.constant 0 : index
    %30 = vector.load %arg7[%c0_16, %c0_17] : memref<8x8xf32, #tpu.memory_space<vmem>>, vector<8x8xf32>
    tpu.vector_store %arg7[%c0_16, %c0_17], %29 {strides = array<i32>} : memref<8x8xf32, #tpu.memory_space<vmem>>, vector<8x8xf32>,
    return
  }
  func.func @transform_0(%arg0: i32) -> (i32, i32, i32) {
    %c0_i32 = arith.constant 0 : i32
    %c0_i32_0 = arith.constant 0 : i32
    %c0_i32_1 = arith.constant 0 : i32
    return %c0_i32, %arg0, %c0_i32_0 : i32, i32, i32
  }
  func.func @transform_1(%arg0: i32) -> (i32, i32) {
    %c0_i32 = arith.constant 0 : i32
    %c0_i32_0 = arith.constant 0 : i32
    return %arg0, %c0_i32 : i32, i32
  }
  func.func @transform_2(%arg0: i32) -> (i32, i32) {
    %c0_i32 = arith.constant 0 : i32
    %c0_i32_0 = arith.constant 0 : i32
    %c0_i32_1 = arith.constant 0 : i32
    return %c0_i32, %c0_i32_0 : i32, i32
  }
  func.func @transform_3(%arg0: i32) -> (i32, i32) {
    %c0_i32 = arith.constant 0 : i32
    %c0_i32_0 = arith.constant 0 : i32
    %c0_i32_1 = arith.constant 0 : i32
    return %c0_i32, %c0_i32_0 : i32, i32
  }
  func.func @transform_4(%arg0: i32) -> (i32, i32) {
    %c0_i32 = arith.constant 0 : i32
    %c0_i32_0 = arith.constant 0 : i32
    %c0_i32_1 = arith.constant 0 : i32
    return %c0_i32, %c0_i32_0 : i32, i32
  }
  func.func @transform_5(%arg0: i32) -> (i32, i32) {
    %c0_i32 = arith.constant 0 : i32
    %c0_i32_0 = arith.constant 0 : i32
    %c0_i32_1 = arith.constant 0 : i32
    return %c0_i32, %c0_i32_0 : i32, i32
  }
  func.func @transform_6(%arg0: i32) -> (i32, i32) {
    %c0_i32 = arith.constant 0 : i32
    %c0_i32_0 = arith.constant 0 : i32
    return %arg0, %c0_i32 : i32, i32
  }
}

</mosaic_0001>

<llo_original>
// kernel: tpu_custom_call.1
$region0: #{tpu_custom_call.1}
  #allocation0 [shape = 'u32[]', space=smem, size = 0x4, offset = 0x4, fixed_abs, tag = 'smem constant byte address 0x4 - core index']
  #allocation1 [shape = 'u32[72,128]{1,0:T(1,128)}', space=vmem, size = 0x9000, scoped, tag = 'internal scratch']
  %s0 = inlined_call_operand.hbm [shape: bf16[8,16,32], index: 0, kind: input, shape index: {}]
  %s1 = inlined_call_operand.hbm [shape: bf16[16,32], index: 1, kind: input, shape index: {}]
  %s2 = inlined_call_operand.hbm [shape: bf16[32,32], index: 2, kind: input, shape index: {}]
  %s3 = inlined_call_operand.hbm [shape: bf16[32,32], index: 3, kind: input, shape index: {}]
  %s4 = inlined_call_operand.vmem [shape: f32[1,32], index: 4, kind: input, shape index: {}]
  %s5 = inlined_call_operand.vmem [shape: f32[1,32], index: 5, kind: input, shape index: {}]
  %s6 = inlined_call_operand.vmem [shape: f32[16,8], index: 6, kind: output, shape index: {}]
  %s7 = sld [smem:[#allocation0]]
  $region73: #{tpu_custom_call.1} parent=0
    _
  %s9 = ssub.s32 1, %s7
  %s10 = scalar_select 0, %s9, %s7
  $region1: #{tpu_custom_call.1} parent=0
    #allocation2 [shape = 'u8[32768]{0}', space=vmem, size = 0x8000, scoped, tag = 'input window, operand 0']
    #allocation3 [shape = 's32[2]{0}', space=sflag, size = 0x8, scoped, tag = 'scoped memory for tpu_custom_call.1']
    #allocation4 [shape = 'u8[4096]{0}', space=vmem, size = 0x1000, scoped, tag = 'input window, operand 1']
    #allocation5 [shape = 's32[2]{0}', space=sflag, size = 0x8, scoped, tag = 'scoped memory for tpu_custom_call.1']
    #allocation6 [shape = 'u8[8192]{0}', space=vmem, size = 0x2000, scoped, tag = 'input window, operand 2, single buffered']
    #allocation7 [shape = 'u8[8192]{0}', space=vmem, size = 0x2000, scoped, tag = 'input window, operand 3, single buffered']
    #allocation8 [shape = 's32[1]{0}', space=sflag, size = 0x4, scoped, tag = 'scoped memory for tpu_custom_call.1']
    %11 = vsyncpa [#allocation3], 0
    %s12 = scalar_lea.sflag [#allocation3], 1
    %13 = vsyncpa %s12, 0
    %14 = vsyncpa [#allocation5], 0
    %s15 = scalar_lea.sflag [#allocation5], 1
    %16 = vsyncpa %s15, 0
    %17 = vsyncpa [#allocation8], 0
    loop: start=0, step=1, limit=4
    $region2: #{tpu_custom_call.1} parent=1 // loop_pre_header
      _
    $region3: #{tpu_custom_call.1} parent=1 // loop_header
      %s19 = sphi 0, %s23
      %p20 = scmp.ge.s32.totalorder %s19, 4
      %s29 = sphi 0, %s31
      %s32 = sphi 0, %s29
      %s33 = sphi 0, %s32
      %s49 = sphi 0, %s33
      %s55 = sphi 0, %s57
      %s58 = sphi 0, %s55
      %s59 = sphi 0, %s58
      %s75 = sphi 0, %s59
      %s79 = sphi 0, %s79
      %s81 = sphi 0, %s79
      %s82 = sphi 0, %s81
      %s96 = sphi 0, %s82
      %s100 = sphi 0, %s100
      %s102 = sphi 0, %s100
      %s103 = sphi 0, %s102
      %s117 = sphi 0, %s103
      %s121 = sphi 0, %s121
      %s123 = sphi 0, %s121
      %s124 = sphi 0, %s123
      %s138 = sphi 0, %s124
      %s142 = sphi 0, %s142
      %s144 = sphi 0, %s142
      %s145 = sphi 0, %s144
      %s159 = sphi 0, %s145
      %s165 = sphi 0, %s167
      %s168 = sphi 0, %s165
      %s169 = sphi 0, %s168
      %s185 = sphi 0, %s169
    $region4: #{tpu_custom_call.1} parent=1 // loop_header_branch
      %22 = sbr.rel (%p20) target = $region8
    $region5: #{tpu_custom_call.1} parent=1 // loop_body
      %s24 = ssub.s32 %s19, 1
      %s25 = ssub.s32 %s19, 2
      %s26 = sadd.s32 %s19, 1
      %s27 = ssub.s32 %s19, %s26
      %p28 = scmp.eq.s32.totalorder %s27, 0
      %s30 = sadd.s32 %s29, 1
      %s31 = scalar_select %p28, %s29, %s30
      %p34 = pneg %p28
      %p35 = scmp.eq.s32.totalorder %s19, 1
      %p36 = por %p34, %p35
      %p37 = scmp.ne.s32.totalorder %s29, %s32
      %p38 = scmp.eq.s32.totalorder %s19, 0
      %p39 = por %p37, %p38
      %p40 = scmp.ne.s32.totalorder %s29, %s32
      %p41 = scmp.eq.s32.totalorder %s24, 1
      %p42 = por %p40, %p41
      %p43 = scmp.ne.s32.totalorder %s32, %s33
      %p44 = scmp.eq.s32.totalorder %s24, 0
      %p45 = por %p43, %p44
      %p46 = scmp.ne.s32.totalorder %s32, %s33
      %p47 = scmp.eq.s32.totalorder %s25, 1
      %p48 = por %p46, %p47
      %p50 = scmp.ne.s32.totalorder %s33, %s49
      %p51 = scmp.eq.s32.totalorder %s25, 0
      %p52 = por %p50, %p51
      %s53 = ssub.s32 %s19, %s26
      %p54 = scmp.eq.s32.totalorder %s53, 0
      %s56 = sadd.s32 %s55, 1
      %s57 = scalar_select %p54, %s55, %s56
      %p60 = pneg %p54
      %p61 = scmp.eq.s32.totalorder %s19, 1
      %p62 = por %p60, %p61
      %p63 = scmp.ne.s32.totalorder %s55, %s58
      %p64 = scmp.eq.s32.totalorder %s19, 0
      %p65 = por %p63, %p64
      %p66 = scmp.ne.s32.totalorder %s55, %s58
      %p67 = scmp.eq.s32.totalorder %s24, 1
      %p68 = por %p66, %p67
      %p69 = scmp.ne.s32.totalorder %s58, %s59
      %p70 = scmp.eq.s32.totalorder %s24, 0
      %p71 = por %p69, %p70
      %p72 = scmp.ne.s32.totalorder %s58, %s59
      %p73 = scmp.eq.s32.totalorder %s25, 1
      %p74 = por %p72, %p73
      %p76 = scmp.ne.s32.totalorder %s59, %s75
      %p77 = scmp.eq.s32.totalorder %s25, 0
      %p78 = por %p76, %p77
      %s80 = sadd.s32 %s79, 1
      %p83 = scmp.eq.s32.totalorder %s19, 1
      %p84 = scmp.ne.s32.totalorder %s79, %s81
      %p85 = scmp.eq.s32.totalorder %s19, 0
      %p86 = por %p84, %p85
      %p87 = scmp.ne.s32.totalorder %s79, %s81
      %p88 = scmp.eq.s32.totalorder %s24, 1
      %p89 = por %p87, %p88
      %p90 = scmp.ne.s32.totalorder %s81, %s82
      %p91 = scmp.eq.s32.totalorder %s24, 0
      %p92 = por %p90, %p91
      %p93 = scmp.ne.s32.totalorder %s81, %s82
      %p94 = scmp.eq.s32.totalorder %s25, 1
      %p95 = por %p93, %p94
      %p97 = scmp.ne.s32.totalorder %s82, %s96
      %p98 = scmp.eq.s32.totalorder %s25, 0
      %p99 = por %p97, %p98
      %s101 = sadd.s32 %s100, 1
      %p104 = scmp.eq.s32.totalorder %s19, 1
      %p105 = scmp.ne.s32.totalorder %s100, %s102
      %p106 = scmp.eq.s32.totalorder %s19, 0
      %p107 = por %p105, %p106
      %p108 = scmp.ne.s32.totalorder %s100, %s102
      %p109 = scmp.eq.s32.totalorder %s24, 1
      %p110 = por %p108, %p109
      %p111 = scmp.ne.s32.totalorder %s102, %s103
      %p112 = scmp.eq.s32.totalorder %s24, 0
      %p113 = por %p111, %p112
      %p114 = scmp.ne.s32.totalorder %s102, %s103
      %p115 = scmp.eq.s32.totalorder %s25, 1
      %p116 = por %p114, %p115
      %p118 = scmp.ne.s32.totalorder %s103, %s117
      %p119 = scmp.eq.s32.totalorder %s25, 0
      %p120 = por %p118, %p119
      %s122 = sadd.s32 %s121, 1
      %p125 = scmp.eq.s32.totalorder %s19, 1
      %p126 = scmp.ne.s32.totalorder %s121, %s123
      %p127 = scmp.eq.s32.totalorder %s19, 0
      %p128 = por %p126, %p127
      %p129 = scmp.ne.s32.totalorder %s121, %s123
      %p130 = scmp.eq.s32.totalorder %s24, 1
      %p131 = por %p129, %p130
      %p132 = scmp.ne.s32.totalorder %s123, %s124
      %p133 = scmp.eq.s32.totalorder %s24, 0
      %p134 = por %p132, %p133
      %p135 = scmp.ne.s32.totalorder %s123, %s124
      %p136 = scmp.eq.s32.totalorder %s25, 1
      %p137 = por %p135, %p136
      %p139 = scmp.ne.s32.totalorder %s124, %s138
      %p140 = scmp.eq.s32.totalorder %s25, 0
      %p141 = por %p139, %p140
      %s143 = sadd.s32 %s142, 1
      %p146 = scmp.eq.s32.totalorder %s19, 1
      %p147 = scmp.ne.s32.totalorder %s142, %s144
      %p148 = scmp.eq.s32.totalorder %s19, 0
      %p149 = por %p147, %p148
      %p150 = scmp.ne.s32.totalorder %s142, %s144
      %p151 = scmp.eq.s32.totalorder %s24, 1
      %p152 = por %p150, %p151
      %p153 = scmp.ne.s32.totalorder %s144, %s145
      %p154 = scmp.eq.s32.totalorder %s24, 0
      %p155 = por %p153, %p154
      %p156 = scmp.ne.s32.totalorder %s144, %s145
      %p157 = scmp.eq.s32.totalorder %s25, 1
      %p158 = por %p156, %p157
      %p160 = scmp.ne.s32.totalorder %s145, %s159
      %p161 = scmp.eq.s32.totalorder %s25, 0
      %p162 = por %p160, %p161
      %s163 = ssub.s32 %s19, %s26
      %p164 = scmp.eq.s32.totalorder %s163, 0
      %s166 = sadd.s32 %s165, 1
      %s167 = scalar_select %p164, %s165, %s166
      %p170 = pneg %p164
      %p171 = scmp.eq.s32.totalorder %s19, 1
      %p172 = por %p170, %p171
      %p173 = scmp.ne.s32.totalorder %s165, %s168
      %p174 = scmp.eq.s32.totalorder %s19, 0
      %p175 = por %p173, %p174
      %p176 = scmp.ne.s32.totalorder %s165, %s168
      %p177 = scmp.eq.s32.totalorder %s24, 1
      %p178 = por %p176, %p177
      %p179 = scmp.ne.s32.totalorder %s168, %s169
      %p180 = scmp.eq.s32.totalorder %s24, 0
      %p181 = por %p179, %p180
      %p182 = scmp.ne.s32.totalorder %s168, %s169
      %p183 = scmp.eq.s32.totalorder %s25, 1
      %p184 = por %p182, %p183
      %p186 = scmp.ne.s32.totalorder %s169, %s185
      %p187 = scmp.eq.s32.totalorder %s25, 0
      %p188 = por %p186, %p187
      %p189 = scmp.le.s32.totalorder 1, %s19
      %p190 = scmp.lt.s32.totalorder %s19, 3
      %p191 = pnand %p189, %p190
      %p192 = pneg %p191
      // Predicated region
      $region9: #{tpu_custom_call.1} parent=5 // pred_check
        _
      $region10: #{tpu_custom_call.1} parent=5 // pred_check_branch
        %194 = sbr.rel (%p191) target = $region12
      $region11: #{tpu_custom_call.1} parent=5 // pred_region
        %s195 = ssub.s32 %s19, 1
        // Predicated region
        $region13: #{tpu_custom_call.1} parent=11 // pred_check
          %p196 = pneg %p92
        $region14: #{tpu_custom_call.1} parent=11 // pred_check_branch
          %198 = sbr.rel (%p196) target = $region16
        $region15: #{tpu_custom_call.1} parent=11 // pred_region
          %200 = vsyncadd [#allocation5], 0
          %s201 = sshll.u32 %s2, 4
          %s202 = int_to_ptr.hbm [resolvable:$true] %s201
          %s203 = sshll.u32 [#allocation6], 4
          %s204 = int_to_ptr.vmem [resolvable:$true] %s203
          %209 = dma.hbm_to_vmem [thread:$0]  %s202, 256, %s204, [#allocation5], 64, 64, 4
        $region16: #{tpu_custom_call.1} parent=11 // pred_fallthru
          _
        // Predicated region
        $region17: #{tpu_custom_call.1} parent=11 // pred_check
          %p210 = pneg %p113
        $region18: #{tpu_custom_call.1} parent=11 // pred_check_branch
          %212 = sbr.rel (%p210) target = $region20
        $region19: #{tpu_custom_call.1} parent=11 // pred_region
          %214 = vsyncadd [#allocation8], 0
          %s215 = sshll.u32 %s3, 4
          %s216 = int_to_ptr.hbm [resolvable:$true] %s215
          %s217 = sshll.u32 [#allocation7], 4
          %s218 = int_to_ptr.vmem [resolvable:$true] %s217
          %223 = dma.hbm_to_vmem [thread:$0]  %s216, 256, %s218, [#allocation8], 64, 64, 4
        $region20: #{tpu_custom_call.1} parent=11 // pred_fallthru
          _
        // Predicated region
        $region21: #{tpu_custom_call.1} parent=11 // pred_check
          %p224 = pneg %p134
        $region22: #{tpu_custom_call.1} parent=11 // pred_check_branch
          %226 = sbr.rel (%p224) target = $region24
        $region23: #{tpu_custom_call.1} parent=11 // pred_region
          _
        $region24: #{tpu_custom_call.1} parent=11 // pred_fallthru
          _
        // Predicated region
        $region25: #{tpu_custom_call.1} parent=11 // pred_check
          %p227 = pneg %p155
        $region26: #{tpu_custom_call.1} parent=11 // pred_check_branch
          %229 = sbr.rel (%p227) target = $region28
        $region27: #{tpu_custom_call.1} parent=11 // pred_region
          _
        $region28: #{tpu_custom_call.1} parent=11 // pred_fallthru
          _
      $region12: #{tpu_custom_call.1} parent=5 // pred_fallthru
        _
      %p230 = scmp.lt.s32.totalorder %s19, 2
      // Predicated region
      $region29: #{tpu_custom_call.1} parent=5 // pred_check
        %p231 = pneg %p230
      $region30: #{tpu_custom_call.1} parent=5 // pred_check_branch
        %233 = sbr.rel (%p231) target = $region32
      $region31: #{tpu_custom_call.1} parent=5 // pred_region
        // Predicated region
        $region33: #{tpu_custom_call.1} parent=31 // pred_check
          %p234 = pneg %p39
        $region34: #{tpu_custom_call.1} parent=31 // pred_check_branch
          %236 = sbr.rel (%p234) target = $region36
        $region35: #{tpu_custom_call.1} parent=31 // pred_region
          %s237 = sand.u32 %s29, 1
          %s238 = scalar_lea.sflag [#allocation3], %s237
          %s239 = sand.u32 %s29, 1
          %s240 = smul.addr %s239, 32
          %s241 = scalar_lea.vmem [#allocation2], %s240
          %243 = vsyncadd %s238, 0
          %s244 = smul.addr %s19, 4
          %s245 = scalar_lea.hbm %s0, %s244
          %s246 = sshll.u32 %s245, 4
          %s247 = int_to_ptr.hbm [resolvable:$true] %s246
          %s248 = sshll.u32 %s241, 4
          %s249 = int_to_ptr.vmem [resolvable:$true] %s248
          %254 = dma.hbm_to_vmem [thread:$0]  %s247, 512, %s249, %s238, 128, 64, 4
        $region36: #{tpu_custom_call.1} parent=31 // pred_fallthru
          _
        // Predicated region
        $region37: #{tpu_custom_call.1} parent=31 // pred_check
          %p255 = pneg %p65
        $region38: #{tpu_custom_call.1} parent=31 // pred_check_branch
          %257 = sbr.rel (%p255) target = $region40
        $region39: #{tpu_custom_call.1} parent=31 // pred_region
          %s258 = sand.u32 %s19, 1
          %s259 = scalar_lea.sflag [#allocation5], %s258
          %s260 = sand.u32 %s55, 1
          %s261 = smul.addr %s260, 4
          %s262 = scalar_lea.vmem [#allocation4], %s261
          %264 = vsyncadd %s259, 0
          %s265 = smul.addr %s19, 4
          %s266 = scalar_lea.hbm %s1, %s265
          %s268 = sshll.u32 %s266, 4
          %s269 = int_to_ptr.hbm [resolvable:$true] %s268
          %s270 = sshll.u32 %s262, 4
          %s271 = int_to_ptr.vmem [resolvable:$true] %s270
          %273 = dma.hbm_to_vmem [thread:$0]  %s269, 64, %s271, %s259
        $region40: #{tpu_custom_call.1} parent=31 // pred_fallthru
          _
      $region32: #{tpu_custom_call.1} parent=5 // pred_fallthru
        _
      %p274 = scmp.le.s32.totalorder 1, %s19
      %p275 = scmp.lt.s32.totalorder %s19, 3
      %p276 = pnand %p274, %p275
      %p277 = pneg %p276
      // Predicated region
      $region41: #{tpu_custom_call.1} parent=5 // pred_check
        _
      $region42: #{tpu_custom_call.1} parent=5 // pred_check_branch
        %279 = sbr.rel (%p276) target = $region44
      $region43: #{tpu_custom_call.1} parent=5 // pred_region
        %s280 = ssub.s32 %s19, 1
        %s281 = sand.u32 %s32, 1
        %s282 = scalar_lea.sflag [#allocation3], %s281
        %s283 = sand.u32 %s32, 1
        %s284 = smul.addr %s283, 32
        %s285 = scalar_lea.vmem [#allocation2], %s284
        // Predicated region
        $region45: #{tpu_custom_call.1} parent=43 // pred_check
          %p286 = pneg %p45
        $region46: #{tpu_custom_call.1} parent=43 // pred_check_branch
          %288 = sbr.rel (%p286) target = $region48
        $region47: #{tpu_custom_call.1} parent=43 // pred_region
          %290 = dma.done %s282, 512
        $region48: #{tpu_custom_call.1} parent=43 // pred_fallthru
          _
        %s291 = sand.u32 %s24, 1
        %s292 = scalar_lea.sflag [#allocation5], %s291
        %s293 = sand.u32 %s58, 1
        %s294 = smul.addr %s293, 4
        %s295 = scalar_lea.vmem [#allocation4], %s294
        // Predicated region
        $region49: #{tpu_custom_call.1} parent=43 // pred_check
          %p296 = pneg %p71
        $region50: #{tpu_custom_call.1} parent=43 // pred_check_branch
          %298 = sbr.rel (%p296) target = $region52
        $region51: #{tpu_custom_call.1} parent=43 // pred_region
          %300 = dma.done %s292, 64
        $region52: #{tpu_custom_call.1} parent=43 // pred_fallthru
          _
        // Predicated region
        $region53: #{tpu_custom_call.1} parent=43 // pred_check
          %p301 = pneg %p92
        $region54: #{tpu_custom_call.1} parent=43 // pred_check_branch
          %303 = sbr.rel (%p301) target = $region56
        $region55: #{tpu_custom_call.1} parent=43 // pred_region
          %305 = dma.done [#allocation5], 256
        $region56: #{tpu_custom_call.1} parent=43 // pred_fallthru
          _
        // Predicated region
        $region57: #{tpu_custom_call.1} parent=43 // pred_check
          %p306 = pneg %p113
        $region58: #{tpu_custom_call.1} parent=43 // pred_check_branch
          %308 = sbr.rel (%p306) target = $region60
        $region59: #{tpu_custom_call.1} parent=43 // pred_region
          %310 = dma.done [#allocation8], 256
        $region60: #{tpu_custom_call.1} parent=43 // pred_fallthru
          _
        %s311 = sand.u32 %s32, 1
        %s312 = scalar_lea.sflag [#allocation3], %s311
        %s313 = sand.u32 %s32, 1
        %s314 = smul.addr %s313, 32
        %s315 = scalar_lea.vmem [#allocation2], %s314
        %p316 = pneg %p45
        %p317 = pneg %p42
        %s318 = sand.u32 %s24, 1
        %s319 = scalar_lea.sflag [#allocation5], %s318
        %s320 = sand.u32 %s58, 1
        %s321 = smul.addr %s320, 4
        %s322 = scalar_lea.vmem [#allocation4], %s321
        %p323 = pneg %p71
        %p324 = pneg %p68
        %p325 = pneg %p92
        %p326 = pneg %p89
        %p327 = pneg %p113
        %p328 = pneg %p110
        %p329 = pneg %p134
        %p330 = pneg %p131
        %p331 = pneg %p155
        %p332 = pneg %p152
        %p333 = pneg %p181
        %p334 = pneg %p178
        %p335 = scmp.lt.s32.totalorder %s24, 1
        %s336 = scalar_select %p335, %s24, 1
        %s337 = smul.addr %s336, 8
        %s338 = scalar_lea.vmem %s6, %s337
        %p339 = scmp.lt.s32.totalorder %s24, 1
        %s340 = scalar_select %p339, %s24, 1
        %s341 = smul.addr %s340, 8
        %s342 = scalar_lea.vmem %s6, %s341
        %v344 = vld [vmem:[%s285] sm:$0xf]
        %v345 = vld [vmem:[%s285 + $0x4] sm:$0xf]
        %v346 = vld [vmem:[%s285 + $0x8] sm:$0xf]
        %v347 = vld [vmem:[%s285 + $0xc] sm:$0xf]
        %v348 = vld [vmem:[%s285 + $0x10] sm:$0xf]
        %v349 = vld [vmem:[%s285 + $0x14] sm:$0xf]
        %v350 = vld [vmem:[%s285 + $0x18] sm:$0xf]
        %v351 = vld [vmem:[%s285 + $0x1c] sm:$0xf]
        %v352 = vld [vmem:[#allocation6] sm:$0xf]
        %v353 = vld [vmem:[#allocation6 + $0x4] sm:$0xf]
        %v354 = vld [vmem:[#allocation6 + $0x8] sm:$0xf]
        %v355 = vld [vmem:[#allocation6 + $0xc] sm:$0xf]
        %v364 = vunpack.c.l.b16 %v344
        %v365 = vunpack.c.l.b16 %v345
        %v366 = vunpack.c.l.b16 %v346
        %v367 = vunpack.c.l.b16 %v347
        %v368 = vunpack.c.l.b16 %v348
        %v369 = vunpack.c.l.b16 %v349
        %v370 = vunpack.c.l.b16 %v350
        %v371 = vunpack.c.l.b16 %v351
        %v372 = vpack.c.b16 %v365, %v364
        %v373 = vpack.c.b16 %v367, %v366
        %v374 = vpack.c.b16 %v369, %v368
        %v375 = vpack.c.b16 %v371, %v370
        %v380 = vunpack.c.l.b16 %v352
        %v381 = vunpack.c.l.b16 %v353
        %v382 = vunpack.c.l.b16 %v354
        %v383 = vunpack.c.l.b16 %v355
        %v384 = vpack.c.b16 %v381, %v380
        %v385 = vpack.c.b16 %v383, %v382
        %vm388 = vcmask 261120
        %v390 = vsel %vm388, %v372, 0
        %v393 = vsel %vm388, %v373, 0
        %v396 = vsel %vm388, %v374, 0
        %v399 = vsel %vm388, %v375, 0
        %401 = vmatpush.bf16.msra.mxu0 0
        %402 = vmatpush.bf16.msra.mxu0 0
        %403 = vmatpush.bf16.msra.mxu0 0
        %404 = vmatpush.bf16.msra.mxu0 0
        %405 = vmatpush.bf16.msra.mxu0 0
        %406 = vmatpush.bf16.msra.mxu0 0
        %407 = vmatpush.bf16.msra.mxu0 %v385
        %408 = vmatpush.bf16.msra.mxu0 %v384
        %409 = vmatmul.bf16.gmra.mxu0 %v390
        %v410 = vpop.f32.mrf.mxu0
        %v411 = vadd.f32 0.0, %v410
        %v412 = vpop.f32.mrf.mxu0
        %v413 = vadd.f32 0.0, %v412
        %414 = vmatmul.bf16.gmra.mxu0 %v393
        %v415 = vpop.f32.mrf.mxu0
        %v416 = vadd.f32 0.0, %v415
        %v417 = vpop.f32.mrf.mxu0
        %v418 = vadd.f32 0.0, %v417
        %419 = vmatmul.bf16.gmra.mxu0 %v396
        %v420 = vpop.f32.mrf.mxu0
        %v421 = vadd.f32 0.0, %v420
        %v422 = vpop.f32.mrf.mxu0
        %v423 = vadd.f32 0.0, %v422
        %424 = vmatmul.bf16.gmra.mxu0 %v399
        %v425 = vpop.f32.mrf.mxu0
        %v426 = vadd.f32 0.0, %v425
        %v427 = vpop.f32.mrf.mxu0
        %v428 = vadd.f32 0.0, %v427
        %429 = vdwg.mxu0
        %v430 = vld [vmem:[%s295] sm:$0xf]
        %v431 = vld [vmem:[#allocation7] sm:$0xf]
        %v432 = vld [vmem:[#allocation7 + $0x4] sm:$0xf]
        %v433 = vld [vmem:[#allocation7 + $0x8] sm:$0xf]
        %v434 = vld [vmem:[#allocation7 + $0xc] sm:$0xf]
        %v435 = vld [vmem:[%s4] sm:$0x1]
        %v437 = vperm.slane %v435, 0
        %v443 = vunpack.c.l.b16 %v431
        %v444 = vunpack.c.l.b16 %v432
        %v445 = vunpack.c.l.b16 %v433
        %v446 = vunpack.c.l.b16 %v434
        %v447 = vpack.c.b16 %v444, %v443
        %v448 = vpack.c.b16 %v446, %v445
        %v452 = vsel %vm388, %v430, 0
        %454 = vmatpush.bf16.msra.mxu0 0
        %455 = vmatpush.bf16.msra.mxu0 0
        %456 = vmatpush.bf16.msra.mxu0 0
        %457 = vmatpush.bf16.msra.mxu0 0
        %458 = vmatpush.bf16.msra.mxu0 0
        %459 = vmatpush.bf16.msra.mxu0 0
        %460 = vmatpush.bf16.msra.mxu0 %v448
        %461 = vmatpush.bf16.msra.mxu0 %v447
        %462 = vmatmul.bf16.gmra.mxu0 %v452
        %v463 = vpop.f32.mrf.mxu0
        %v464 = vadd.f32 %v437, %v463
        %v465 = vpop.f32.mrf.mxu0
        %466 = vdwg.mxu0
        %v467 = vadd.f32 %v411, %v464
        %v468 = vadd.f32 %v413, %v464
        %v469 = vadd.f32 %v416, %v464
        %v470 = vadd.f32 %v418, %v464
        %v471 = vadd.f32 %v421, %v464
        %v472 = vadd.f32 %v423, %v464
        %v473 = vadd.f32 %v426, %v464
        %v474 = vadd.f32 %v428, %v464
        %v475 = vtanh.pop %v467
        %v476 = vtanh.pop %v468
        %v477 = vtanh.pop %v469
        %v478 = vtanh.pop %v470
        %v479 = vtanh.pop %v471
        %v480 = vtanh.pop %v472
        %v481 = vtanh.pop %v473
        %v482 = vtanh.pop %v474
        %v483 = vld [vmem:[%s5] sm:$0x1]
        %v485 = vperm.slane %v483, 0
        %v487 = vmul.f32 %v475, %v485
        %v488 = vmul.f32 %v476, %v485
        %v489 = vmul.f32 %v477, %v485
        %v490 = vmul.f32 %v478, %v485
        %v491 = vmul.f32 %v479, %v485
        %v492 = vmul.f32 %v480, %v485
        %v493 = vmul.f32 %v481, %v485
        %v494 = vmul.f32 %v482, %v485
        %v495 = vsel %vm388, %v487, 0.0
        %496 = vadd.xlane.f32.xlu0 %v495
        %v497 = vpop.xlane.xlu0 %496
        %v498 = vsel %vm388, %v488, 0.0
        %499 = vadd.xlane.f32.xlu0 %v498
        %v500 = vpop.xlane.xlu0 %499
        %v501 = vsel %vm388, %v489, 0.0
        %502 = vadd.xlane.f32.xlu0 %v501
        %v503 = vpop.xlane.xlu0 %502
        %v504 = vsel %vm388, %v490, 0.0
        %505 = vadd.xlane.f32.xlu0 %v504
        %v506 = vpop.xlane.xlu0 %505
        %v507 = vsel %vm388, %v491, 0.0
        %508 = vadd.xlane.f32.xlu0 %v507
        %v509 = vpop.xlane.xlu0 %508
        %v510 = vsel %vm388, %v492, 0.0
        %511 = vadd.xlane.f32.xlu0 %v510
        %v512 = vpop.xlane.xlu0 %511
        %v513 = vsel %vm388, %v493, 0.0
        %514 = vadd.xlane.f32.xlu0 %v513
        %v515 = vpop.xlane.xlu0 %514
        %v516 = vsel %vm388, %v494, 0.0
        %517 = vadd.xlane.f32.xlu0 %v516
        %v518 = vpop.xlane.xlu0 %517
        %v527 = vlaneseq
        %v528 = vand.u32 %v527, 127
        %v529 = vperm.slane %v497, %v528
        %v530 = vperm.slane %v500, %v528
        %v531 = vperm.slane %v503, %v528
        %v532 = vperm.slane %v506, %v528
        %v533 = vperm.slane %v509, %v528
        %v534 = vperm.slane %v512, %v528
        %v535 = vperm.slane %v515, %v528
        %v536 = vperm.slane %v518, %v528
        %vm537 = vcmask 1041409
        %v538 = vsel %vm537, %v530, %v529
        %vm539 = vcmask 1042434
        %v540 = vsel %vm539, %v531, %v538
        %vm541 = vcmask 1043459
        %v542 = vsel %vm541, %v532, %v540
        %vm543 = vcmask 1044484
        %v544 = vsel %vm543, %v533, %v542
        %vm545 = vcmask 1045509
        %v546 = vsel %vm545, %v534, %v544
        %vm547 = vcmask 1046534
        %v548 = vsel %vm547, %v535, %v546
        %vm549 = vcmask 1047559
        %v550 = vsel %vm549, %v536, %v548
        %552 = vxpose.xlu0.b32.start [1/16] %v550, 128
        %553 = vxpose.xlu0.b32.cont [2/16] 0.0, 128
        %554 = vxpose.xlu0.b32.cont [3/16] 0.0, 128
        %555 = vxpose.xlu0.b32.cont [4/16] 0.0, 128
        %556 = vxpose.xlu0.b32.cont [5/16] 0.0, 128
        %557 = vxpose.xlu0.b32.cont [6/16] 0.0, 128
        %558 = vxpose.xlu0.b32.cont [7/16] 0.0, 128
        %559 = vxpose.xlu0.b32.cont [8/16] 0.0, 128
        %560 = vxpose.xlu0.b32.cont [9/16] 0.0, 128
        %561 = vxpose.xlu0.b32.cont [10/16] 0.0, 128
        %562 = vxpose.xlu0.b32.cont [11/16] 0.0, 128
        %563 = vxpose.xlu0.b32.cont [12/16] 0.0, 128
        %564 = vxpose.xlu0.b32.cont [13/16] 0.0, 128
        %565 = vxpose.xlu0.b32.cont [14/16] 0.0, 128
        %566 = vxpose.xlu0.b32.cont [15/16] 0.0, 128
        %567 = vxpose.xlu0.b32.end [16/16] 0.0, 128
        %v568 = vpop.trf.xlu0
        %v569 = vpop.trf.xlu0
        %v570 = vpop.trf.xlu0
        %v571 = vpop.trf.xlu0
        %v572 = vpop.trf.xlu0
        %v573 = vpop.trf.xlu0
        %v574 = vpop.trf.xlu0
        %v575 = vpop.trf.xlu0
        %v576 = vpop.trf.xlu0
        %v577 = vpop.trf.xlu0
        %v578 = vpop.trf.xlu0
        %v579 = vpop.trf.xlu0
        %v580 = vpop.trf.xlu0
        %v581 = vpop.trf.xlu0
        %v582 = vpop.trf.xlu0
        %v583 = vpop.trf.xlu0
        %vm584 = vcmask 64512
        %v585 = vsel %vm584, %v568, -inf
        %586 = vmax.xlane.f32.xlu0 %v585
        %v587 = vpop.xlane.xlu0 %586
        %v588 = vsub.f32 %v568, %v587
        %v589 = vmul.f32 %v588, 1.442695
        %v590 = vpow.pop %v589
        %v591 = vsel %vm584, %v590, 0.0
        %592 = vadd.xlane.f32.xlu0 %v591
        %v593 = vpop.xlane.xlu0 %592
        %v594 = vrcp.pop %v593
        %v595 = vmul.f32 %v593, %v594
        %v596 = vsub.f32 1.0, %v595
        %v597 = vmul.f32 %v594, %v596
        %v598 = vadd.f32 %v594, %v597
        %vm599 = vweird.f32 %v593
        %vm600 = vweird.f32 %v594
        %vm601 = vmor %vm599, %vm600
        %v602 = vsel %vm601, %v594, %v598
        %v603 = vand.u32 2147483647, %v593
        %vm604 = vcmp.eq.f32.partialorder %v603, 8.507059e+37
        %v605 = vand.u32 %v593, 2147483648
        %v606 = vor.u32 1.1754944e-38, %v605
        %v607 = vsel %vm604, %v606, %v602
        %v608 = vmul.f32 %v590, %v607
        %609 = vst.msk [vmem:[%s342] sm:$0xff] %vm584, %v608
        %p610 = scmp.lt.s32.totalorder %s24, 1
        %s611 = scalar_select %p610, %s24, 1
        %s612 = smul.addr %s611, 8
        %s613 = scalar_lea.vmem %s6, %s612
        // Predicated region
        $region61: #{tpu_custom_call.1} parent=43 // pred_check
          %p614 = pneg %p178
        $region62: #{tpu_custom_call.1} parent=43 // pred_check_branch
          %616 = sbr.rel (%p614) target = $region64
        $region63: #{tpu_custom_call.1} parent=43 // pred_region
          _
        $region64: #{tpu_custom_call.1} parent=43 // pred_fallthru
          _
      $region44: #{tpu_custom_call.1} parent=5 // pred_fallthru
        _
      %p617 = scmp.le.s32.totalorder 2, %s19
      // Predicated region
      $region65: #{tpu_custom_call.1} parent=5 // pred_check
        %p618 = pneg %p617
      $region66: #{tpu_custom_call.1} parent=5 // pred_check_branch
        %620 = sbr.rel (%p618) target = $region68
      $region67: #{tpu_custom_call.1} parent=5 // pred_region
        %s621 = ssub.s32 %s19, 2
        // Predicated region
        $region69: #{tpu_custom_call.1} parent=67 // pred_check
          %p622 = pneg %p184
        $region70: #{tpu_custom_call.1} parent=67 // pred_check_branch
          %624 = sbr.rel (%p622) target = $region72
        $region71: #{tpu_custom_call.1} parent=67 // pred_region
          %p625 = scmp.lt.s32.totalorder %s25, 1
          %s626 = scalar_select %p625, %s25, 1
          %s627 = smul.addr %s626, 8
          %s628 = scalar_lea.vmem %s6, %s627
        $region72: #{tpu_custom_call.1} parent=67 // pred_fallthru
          _
      $region68: #{tpu_custom_call.1} parent=5 // pred_fallthru
        _
    $region6: #{tpu_custom_call.1} parent=1 // loop_footer
      %s23 = sadd.s32 1, %s19
    $region7: #{tpu_custom_call.1} parent=1 // loop_footer_branch
      %18 = sbr.rel target = $region3
    $region8: #{tpu_custom_call.1} parent=1 // loop_exit
      _
    %629 = vsyncpa [#allocation3], 1
    %s630 = scalar_lea.sflag [#allocation3], 1
    %631 = vsyncpa %s630, 1
    %632 = vsyncpa [#allocation5], 1
    %s633 = scalar_lea.sflag [#allocation5], 1
    %634 = vsyncpa %s633, 1
    %635 = vsyncpa [#allocation8], 1

</llo_original>
